<compile_context>
chip_gen: v5e
topology: v5e:2x2
jax: 0.10.0
libtpu: 0.0.40
codegen_flags: <defaults>
</compile_context>

<pallas_src>
import math

import jax
import jax.numpy as jnp
from jax.experimental import pallas as pl
from jax.experimental.pallas import tpu as pltpu


_LANE = 128
_SUBLANE = 8
_TM_CAP = 4096  # rows per grid step cap (4 MiB f32 output at tn=256)


def _vmem_capacity_bytes() -> int:
    """Physical VMEM of the current TPU generation; conservative fallback."""
    try:
        info = pltpu.get_tpu_info()
        cap = getattr(info, "vmem_capacity_bytes", None)
        if cap:
            return int(cap)
    except Exception:
        pass
    return 64 * 1024 * 1024  # v7x-sized fallback, safe everywhere


def _choose_tiles(M: int, dim: int, P: int,
                  in_itemsize: int, out_itemsize: int, budget: int):
    """Pick (tm, tn). Prefer tn == P (dictionary VMEM-resident), then grow tm
    as large as the double-buffered working set allows (store-bound kernel:
    big tiles amortize the ~0.35 us per-grid-step overhead)."""

    def footprint(tm, tn):
        # double-buffered coeff tile, dict tile and output tile
        return 2 * (tm * dim * in_itemsize
                    + dim * tn * in_itemsize
                    + tm * tn * out_itemsize)

    tm_min = M if M < _SUBLANE else _SUBLANE

    # Column tile: keep the whole dictionary resident whenever it fits.
    tn = P
    if P > _LANE and footprint(tm_min, tn) > budget:
        tn = (P // _LANE) * _LANE
        while tn > _LANE and footprint(tm_min, tn) > budget:
            tn = max(_LANE, ((tn // 2) // _LANE) * _LANE)

    # Row tile.
    if M <= _SUBLANE:
        tm = M
    else:
        tm = min(_TM_CAP, (M // _SUBLANE) * _SUBLANE)
        while tm > _SUBLANE and footprint(tm, tn) > budget:
            tm = max(_SUBLANE, ((tm // 2) // _SUBLANE) * _SUBLANE)
    return tm, tn


def _mul_dict_kernel(coeff_ref, dict_ref, out_ref):
    # coeff_ref: (tm, dim)   dict_ref: (dim, tn)   out_ref: (tm, tn)
    out_ref[...] = jnp.dot(
        coeff_ref[...], dict_ref[...], preferred_element_type=jnp.float32
    ).astype(out_ref.dtype)


def mul_dictionary_forward(coeff: jax.Array, dictionary: jax.Array,
                           *, out_dtype=None,
                           vmem_limit_bytes: int | None = None,
                           interpret: bool = False) -> jax.Array:
    """coeff: (B, N, dim), dictionary: (dim, S, S) -> (B, N, S, S)."""
    B, N, dim = coeff.shape
    d_dim, S, S2 = dictionary.shape
    assert d_dim == dim and S == S2

    M = B * N            # rows of the matmul
    P = S * S            # columns of the matmul
    out_dtype = coeff.dtype if out_dtype is None else jnp.dtype(out_dtype)

    coeff2d = coeff.reshape(M, dim)
    dict2d = dictionary.reshape(dim, P)

    cap = _vmem_capacity_bytes()
    budget = cap // 2                                  # tile working-set budget
    if vmem_limit_bytes is None:
        vmem_limit_bytes = min((cap * 3) // 4, 112 * 1024 * 1024)

    in_itemsize = max(coeff2d.dtype.itemsize, dict2d.dtype.itemsize)
    out_itemsize = jnp.dtype(out_dtype).itemsize
    tm, tn = _choose_tiles(M, dim, P, in_itemsize, out_itemsize, budget)

    cost = pl.CostEstimate(
        flops=2 * M * dim * P,
        transcendentals=0,
        bytes_accessed=(coeff2d.dtype.itemsize * M * dim
                        + dict2d.dtype.itemsize * dim * P
                        + out_itemsize * M * P),
    )

    if tn == P:
        # Dictionary fully VMEM-resident: single (row) grid axis so the two
        # v7x TensorCores split row blocks directly.
        grid = (pl.cdiv(M, tm),)
        in_specs = [
            pl.BlockSpec((tm, dim), lambda i: (i, 0)),
            pl.BlockSpec((dim, P), lambda i: (0, 0)),
        ]
        out_specs = pl.BlockSpec((tm, P), lambda i: (i, 0))
        dim_sem = ("parallel",)
    else:
        # Column axis OUTER so each dictionary block is fetched once and
        # reused across all row steps.
        grid = (pl.cdiv(P, tn), pl.cdiv(M, tm))
        in_specs = [
            pl.BlockSpec((tm, dim), lambda j, i: (i, 0)),
            pl.BlockSpec((dim, tn), lambda j, i: (0, j)),
        ]
        out_specs = pl.BlockSpec((tm, tn), lambda j, i: (i, j))
        dim_sem = ("parallel", "parallel")

    out2d = pl.pallas_call(
        _mul_dict_kernel,
        out_shape=jax.ShapeDtypeStruct((M, P), out_dtype),
        grid_spec=pltpu.PrefetchScalarGridSpec(
            num_scalar_prefetch=0,
            grid=grid,
            in_specs=in_specs,
            out_specs=out_specs,
        ),
        compiler_params=pltpu.CompilerParams(
            dimension_semantics=dim_sem,
            vmem_limit_bytes=vmem_limit_bytes,
        ),
        cost_estimate=cost,
        interpret=interpret,
    )(coeff2d, dict2d)

    return out2d.reshape(B, N, S, S)


def init_dictionary(key, dim: int, img_size: int, gain: float = 0.01) -> jax.Array:
    # Matches torch.nn.init.xavier_uniform_ for a 3-D tensor of shape
    # (dim, S, S): fan_in = S*S, fan_out = dim*S.
    fan_in = img_size * img_size
    fan_out = dim * img_size
    bound = gain * math.sqrt(6.0 / (fan_in + fan_out))
    return jax.random.uniform(
        key, (dim, img_size, img_size), jnp.float32, minval=-bound, maxval=bound
    )


if __name__ == "__main__":
    B, N, dim, img_size = 2, 8, 32, 16

    key = jax.random.PRNGKey(0)
    k_dict, k_coeff = jax.random.split(key)

    dictionary = init_dictionary(k_dict, dim, img_size)
    coeff = jax.random.normal(k_coeff, (B, N, dim), jnp.float32)

    out = mul_dictionary_forward(coeff, dictionary)
    out = jax.block_until_ready(out)

    # sanity check against plain-JAX reference (same semantics as the torch op)
    ref = jnp.matmul(coeff, dictionary.reshape(1, dim, -1)).reshape(
        -1, N, img_size, img_size
    )
    assert out.shape == (B, N, img_size, img_size)
    assert jnp.allclose(out, ref, atol=1e-5, rtol=1e-5)

    print("KERNEL_OK")
</pallas_src>

<mosaic_0001>
module attributes {stable_mosaic.version = 11 : i64} {
  func.func @_mul_dict_kernel(%arg0: i32, %arg1: memref<16x32xf32, #tpu.memory_space<vmem>>, %arg2: memref<32x256xf32, #tpu.memory_space<vmem>>, %arg3: memref<16x256xf32, #tpu.memory_space<vmem>>) attributes {dimension_semantics = [#tpu.dimension_semantics<parallel>], iteration_bounds = array<i64: 1>, scalar_prefetch = 0 : i64, scratch_operands = 0 : i64, tpu.core_type = #tpu.core_type<tc>, window_params = [{transform_indices = @transform_0, window_bounds = array<i64: 16, 32>}, {pipeline_mode = #tpu.pipeline_mode<synchronous>, transform_indices = @transform_1, window_bounds = array<i64: 32, 256>}, {transform_indices = @transform_2, window_bounds = array<i64: 16, 256>}]} {
    %c0 = arith.constant 0 : index
    %c0_0 = arith.constant 0 : index
    %0 = vector.load %arg1[%c0, %c0_0] : memref<16x32xf32, #tpu.memory_space<vmem>>, vector<16x32xf32>
    %c0_1 = arith.constant 0 : index
    %c0_2 = arith.constant 0 : index
    %1 = vector.load %arg2[%c0_1, %c0_2] : memref<32x256xf32, #tpu.memory_space<vmem>>, vector<32x256xf32>
    %cst = arith.constant dense<0.000000e+00> : vector<16x256xf32>
    %2 = tpu.matmul %0, %1, %cst {dimension_numbers = #tpu.dot_dimension_numbers<[1], [0], [0], [1], [0, 0, 1, 1], [], []>} : vector<16x32xf32>, vector<32x256xf32>, vector<16x256xf32> -> vector<16x256xf32>
    %c0_3 = arith.constant 0 : index
    %c0_4 = arith.constant 0 : index
    %3 = vector.load %arg3[%c0_3, %c0_4] : memref<16x256xf32, #tpu.memory_space<vmem>>, vector<16x256xf32>
    tpu.vector_store %arg3[%c0_3, %c0_4], %2 {strides = array<i32>} : memref<16x256xf32, #tpu.memory_space<vmem>>, vector<16x256xf32>,
    return
  }
  func.func @transform_0(%arg0: i32) -> (i32, i32) {
    %c0_i32 = arith.constant 0 : i32
    %c0_i32_0 = arith.constant 0 : i32
    return %arg0, %c0_i32 : i32, i32
  }
  func.func @transform_1(%arg0: i32) -> (i32, i32) {
    %c0_i32 = arith.constant 0 : i32
    %c0_i32_0 = arith.constant 0 : i32
    %c0_i32_1 = arith.constant 0 : i32
    return %c0_i32, %c0_i32_0 : i32, i32
  }
  func.func @transform_2(%arg0: i32) -> (i32, i32) {
    %c0_i32 = arith.constant 0 : i32
    %c0_i32_0 = arith.constant 0 : i32
    return %arg0, %c0_i32 : i32, i32
  }
}

</mosaic_0001>

<llo_original>
// kernel: tpu_custom_call.1
$region0: #{tpu_custom_call.1}
  #allocation0 [shape = 'u32[]', space=smem, size = 0x4, offset = 0x4, fixed_abs, tag = 'smem constant byte address 0x4 - core index']
  #allocation1 [shape = 'u32[72,128]{1,0:T(1,128)}', space=vmem, size = 0x9000, scoped, tag = 'internal scratch']
  %s0 = inlined_call_operand.hbm [shape: f32[16,32], index: 0, kind: input, shape index: {}]
  %s1 = inlined_call_operand.hbm [shape: f32[32,256], index: 1, kind: input, shape index: {}]
  %s2 = inlined_call_operand.hbm [shape: f32[16,256], index: 2, kind: output, shape index: {}]
  %s3 = sld [smem:[#allocation0]]
  $region26: #{tpu_custom_call.1} parent=0
    _
  %s5 = ssub.s32 1, %s3
  %s6 = scalar_select 0, %s5, %s3
  $region1: #{tpu_custom_call.1} parent=0
    #allocation2 [shape = 'u8[8192]{0}', space=vmem, size = 0x2000, scoped, tag = 'input window, operand 0, single buffered']
    #allocation3 [shape = 's32[1]{0}', space=sflag, size = 0x4, scoped, tag = 'scoped memory for tpu_custom_call.1']
    #allocation4 [shape = 's32[1]{0}', space=sflag, size = 0x4, scoped, tag = 'scoped memory for tpu_custom_call.1']
    #allocation5 [shape = 'u8[32768]{0}', space=vmem, size = 0x8000, scoped, tag = 'input window, operand 1, single buffered']
    #allocation6 [shape = 's32[1]{0}', space=sflag, size = 0x4, scoped, tag = 'scoped memory for tpu_custom_call.1']
    #allocation7 [shape = 'u8[16384]{0}', space=vmem, size = 0x4000, scoped, tag = 'output window, operand 0, single buffered']
    %7 = vsyncpa [#allocation3], 0
    %8 = vsyncpa [#allocation6], 0
    %9 = vsyncpa [#allocation4], 0
    // Predicated region
    $region2: #{tpu_custom_call.1} parent=1 // pred_check
      _
    $region3: #{tpu_custom_call.1} parent=1 // pred_check_branch
      %11 = sbr.rel (0) target = $region5
    $region4: #{tpu_custom_call.1} parent=1 // pred_region
      %13 = vsyncadd [#allocation3], 0
      %s14 = sshll.u32 %s0, 4
      %s15 = int_to_ptr.hbm [resolvable:$true] %s14
      %s16 = sshll.u32 [#allocation2], 4
      %s17 = int_to_ptr.vmem [resolvable:$true] %s16
      %22 = dma.hbm_to_vmem [thread:$0]  %s15, 256, %s17, [#allocation3], 128, 128, 8
    $region5: #{tpu_custom_call.1} parent=1 // pred_fallthru
      _
    // Predicated region
    $region6: #{tpu_custom_call.1} parent=1 // pred_check
      _
    $region7: #{tpu_custom_call.1} parent=1 // pred_check_branch
      %24 = sbr.rel (0) target = $region9
    $region8: #{tpu_custom_call.1} parent=1 // pred_region
      %26 = vsyncadd [#allocation6], 0
      %s27 = sshll.u32 %s1, 4
      %s28 = int_to_ptr.hbm [resolvable:$true] %s27
      %s29 = sshll.u32 [#allocation5], 4
      %s30 = int_to_ptr.vmem [resolvable:$true] %s29
      %35 = dma.hbm_to_vmem [thread:$0]  %s28, 1024, %s30, [#allocation6], 256, 256, 16
    $region9: #{tpu_custom_call.1} parent=1 // pred_fallthru
      _
    // Predicated region
    $region10: #{tpu_custom_call.1} parent=1 // pred_check
      _
    $region11: #{tpu_custom_call.1} parent=1 // pred_check_branch
      %37 = sbr.rel (0) target = $region13
    $region12: #{tpu_custom_call.1} parent=1 // pred_region
      %39 = dma.done [#allocation3], 256
    $region13: #{tpu_custom_call.1} parent=1 // pred_fallthru
      _
    // Predicated region
    $region14: #{tpu_custom_call.1} parent=1 // pred_check
      _
    $region15: #{tpu_custom_call.1} parent=1 // pred_check_branch
      %41 = sbr.rel (0) target = $region17
    $region16: #{tpu_custom_call.1} parent=1 // pred_region
      %43 = dma.done [#allocation6], 1024
    $region17: #{tpu_custom_call.1} parent=1 // pred_fallthru
      _
    %v44 = vld [vmem:[#allocation2] sm:$0xff]
    %v45 = vld [vmem:[#allocation2 + $0x8] sm:$0xff]
    %v46 = vld [vmem:[#allocation5] sm:$0xff]
    %v47 = vld [vmem:[#allocation5 + $0x8] sm:$0xff]
    %v48 = vld [vmem:[#allocation5 + $0x10] sm:$0xff]
    %v49 = vld [vmem:[#allocation5 + $0x18] sm:$0xff]
    %v50 = vld [vmem:[#allocation5 + $0x20] sm:$0xff]
    %v51 = vld [vmem:[#allocation5 + $0x28] sm:$0xff]
    %v52 = vld [vmem:[#allocation5 + $0x30] sm:$0xff]
    %v53 = vld [vmem:[#allocation5 + $0x38] sm:$0xff]
    %vm54 = vcmask 261120
    %v56 = vsel %vm54, %v44, 0
    %v59 = vsel %vm54, %v45, 0
    %61 = vmatpush.msra.mxu0 0.0
    %62 = vmatpush.msra.mxu0 0.0
    %63 = vmatpush.msra.mxu0 0.0
    %64 = vmatpush.msra.mxu0 0.0
    %65 = vmatpush.msra.mxu0 0.0
    %66 = vmatpush.msra.mxu0 0.0
    %67 = vmatpush.msra.mxu0 0.0
    %68 = vmatpush.msra.mxu0 0.0
    %69 = vmatpush.msra.mxu0 0.0
    %70 = vmatpush.msra.mxu0 0.0
    %71 = vmatpush.msra.mxu0 0.0
    %72 = vmatpush.msra.mxu0 0.0
    %73 = vmatpush.msra.mxu0 %v52
    %74 = vmatpush.msra.mxu0 %v50
    %75 = vmatpush.msra.mxu0 %v48
    %76 = vmatpush.msra.mxu0 %v46
    %77 = vmatmul.f32.gmra.mxu0 %v56
    %v78 = vpop.f32.mrf.mxu0
    %v79 = vadd.f32 0.0, %v78
    %80 = vmatmul.f32.gmra.mxu0 %v59
    %v81 = vpop.f32.mrf.mxu0
    %v82 = vadd.f32 0.0, %v81
    %83 = vdwg.mxu0
    %84 = vmatpush.msra.mxu0 0.0
    %85 = vmatpush.msra.mxu0 0.0
    %86 = vmatpush.msra.mxu0 0.0
    %87 = vmatpush.msra.mxu0 0.0
    %88 = vmatpush.msra.mxu0 0.0
    %89 = vmatpush.msra.mxu0 0.0
    %90 = vmatpush.msra.mxu0 0.0
    %91 = vmatpush.msra.mxu0 0.0
    %92 = vmatpush.msra.mxu0 0.0
    %93 = vmatpush.msra.mxu0 0.0
    %94 = vmatpush.msra.mxu0 0.0
    %95 = vmatpush.msra.mxu0 0.0
    %96 = vmatpush.msra.mxu0 %v53
    %97 = vmatpush.msra.mxu0 %v51
    %98 = vmatpush.msra.mxu0 %v49
    %99 = vmatpush.msra.mxu0 %v47
    %100 = vmatmul.f32.gmra.mxu0 %v56
    %v101 = vpop.f32.mrf.mxu0
    %v102 = vadd.f32 0.0, %v101
    %103 = vmatmul.f32.gmra.mxu0 %v59
    %v104 = vpop.f32.mrf.mxu0
    %v105 = vadd.f32 0.0, %v104
    %106 = vdwg.mxu0
    %107 = vst [vmem:[#allocation7] sm:$0xff] %v79
    %108 = vst [vmem:[#allocation7 + $0x8] sm:$0xff] %v102
    %109 = vst [vmem:[#allocation7 + $0x10] sm:$0xff] %v82
    %110 = vst [vmem:[#allocation7 + $0x18] sm:$0xff] %v105
    // Predicated region
    $region18: #{tpu_custom_call.1} parent=1 // pred_check
      _
    $region19: #{tpu_custom_call.1} parent=1 // pred_check_branch
      %112 = sbr.rel (0) target = $region21
    $region20: #{tpu_custom_call.1} parent=1 // pred_region
      %114 = vsyncadd [#allocation4], 0
      %s115 = sshll.u32 [#allocation7], 4
      %s116 = int_to_ptr.vmem [resolvable:$true] %s115
      %s117 = sshll.u32 %s2, 4
      %s118 = int_to_ptr.hbm [resolvable:$true] %s117
      %123 = dma.vmem_to_hbm [thread:$0]  %s116, 512, %s118, [#allocation4], 256, 256, 16
    $region21: #{tpu_custom_call.1} parent=1 // pred_fallthru
      _
    // Predicated region
    $region22: #{tpu_custom_call.1} parent=1 // pred_check
      _
    $region23: #{tpu_custom_call.1} parent=1 // pred_check_branch
      %125 = sbr.rel (0) target = $region25
    $region24: #{tpu_custom_call.1} parent=1 // pred_region
      %127 = dma.done [#allocation4], 512
    $region25: #{tpu_custom_call.1} parent=1 // pred_fallthru
      _
    %128 = vsyncpa [#allocation3], 1
    %129 = vsyncpa [#allocation6], 1
    %130 = vsyncpa [#allocation4], 1

</llo_original>
